<compile_context>
chip_gen: v7x
topology: tpu7x:2x2x1
jax: 0.10.0
libtpu: 0.0.40
codegen_flags: <defaults>
</compile_context>

<pallas_src>
import functools

import jax
import jax.numpy as jnp
import numpy as np
from jax.experimental import pallas as pl
from jax.experimental.pallas import tpu as pltpu


def _round_up(x, m):
    return (x + m - 1) // m * m


def _choose_ts(S, L):
    if S <= 128:
        return _round_up(S, 8)
    ts = 128
    # Bound the double-buffered input block for very large vocabularies
    # (keeps well under v7x's smaller scoped-VMEM budget).
    while ts > 8 and 2 * ts * L * 4 > (8 << 20):
        ts //= 2
    return ts


def _greedy_kernel(e_ref, out_ref, carry_ref, *, blank: int):
    s_tile = pl.program_id(1)

    # Reset the cross-tile carry at the start of every utterance (batch row).
    @pl.when(s_tile == 0)
    def _():
        carry_ref[...] = jnp.full((1, 1), -1, jnp.int32)

    x = e_ref[0]                                   # (TS, L) logits
    TS, L = x.shape

    # First-occurrence argmax over the label (lane) axis, matching np.argmax.
    # NOTE: NaN logits make idx == L (sentinel); torch.argmax differs on NaN.
    lane = jax.lax.broadcasted_iota(jnp.int32, (TS, L), 1)
    mx = jnp.max(x, axis=-1, keepdims=True)                              # (TS, 1)
    idx = jnp.min(jnp.where(x == mx, lane, L), axis=-1, keepdims=True)   # (TS, 1)

    # unique_consecutive + blank removal as a keep mask; prev of the first row
    # of this tile is the carried last argmax of the previous tile (-1 at t=0).
    prev = pltpu.roll(idx, shift=1, axis=0)
    row = jax.lax.broadcasted_iota(jnp.int32, (TS, 1), 0)
    prev = jnp.where(row == 0, carry_ref[...], prev)
    keep = jnp.logical_and(idx != blank, idx != prev).astype(jnp.int32)

    carry_ref[...] = idx[TS - 1:TS, :]             # last argmax of this tile

    packed = idx + keep * (1 << 16)                # keep -> bit 16, idx -> low bits

    # Relayout (TS, 1) -> (1, TS) without relying on Mosaic reshape/transpose:
    # diagonal select + sublane reduction (pure VPU/XLU work on resident vregs).
    sub = jax.lax.broadcasted_iota(jnp.int32, (TS, TS), 0)
    ln = jax.lax.broadcasted_iota(jnp.int32, (TS, TS), 1)
    row_major = jnp.sum(
        jnp.where(sub == ln, packed.astype(jnp.float32), 0.0),
        axis=0, keepdims=True).astype(jnp.int32)   # (1, TS), exact (< 2**24)

    # Write this tile's lane-dense row into the utterance-resident output block.
    out_ref[:, pl.ds(s_tile, 1), :] = row_major[:, None, :]


@functools.partial(jax.jit, static_argnames=("blank",))
def greedy_decode_packed(emission: jax.Array, blank: int = 0) -> jax.Array:
    """emission: (B, S, L) logits -> (B, nS, TS) int32 packed (keep<<16 | idx)."""
    B, S, L = emission.shape
    TS = _choose_ts(S, L)
    S_pad = _round_up(S, TS)
    nS = S_pad // TS
    if S_pad != S:
        emission = jnp.pad(emission, ((0, 0), (0, S_pad - S), (0, 0)))

    kernel = functools.partial(_greedy_kernel, blank=blank)
    return pl.pallas_call(
        kernel,
        out_shape=jax.ShapeDtypeStruct((B, nS, TS), jnp.int32),
        grid_spec=pltpu.PrefetchScalarGridSpec(
            num_scalar_prefetch=0,
            grid=(B, nS),
            in_specs=[pl.BlockSpec((1, TS, L), lambda b, s: (b, s, 0))],
            out_specs=pl.BlockSpec((1, nS, TS), lambda b, s: (b, 0, 0)),
            scratch_shapes=[pltpu.VMEM((1, 1), jnp.int32)],
        ),
        compiler_params=pltpu.CompilerParams(
            dimension_semantics=("parallel", "arbitrary")),
    )(emission)


class GreedyDecoder:
    """JAX/Pallas port of the PyTorch GreedyDecoder module."""

    def __init__(self, labels, blank: int = 0):
        self.labels = labels
        self.blank = blank
        self.name = "Greedy"

    def decode_batch(self, emissions) -> list:
        emissions = jnp.asarray(emissions)
        B, S, _ = emissions.shape
        packed = greedy_decode_packed(emissions, blank=self.blank)
        jax.block_until_ready(packed)
        packed_np = np.asarray(packed).reshape(B, -1)[:, :S]
        idx = packed_np & 0xFFFF
        keep = (packed_np >> 16).astype(bool)
        out = []
        for b in range(B):
            kept = idx[b][keep[b]]
            # TODO(synk): variable-length gather + string join has no Pallas
            # equivalent; done host-side (vectorized boolean mask + join).
            out.append("".join(self.labels[int(i)] for i in kept))
        return out

    def __call__(self, emission) -> str:
        emission = jnp.asarray(emission)            # [num_seq, num_label]
        return self.decode_batch(emission[None])[0]


def _reference_decode(emission: np.ndarray, labels, blank: int) -> str:
    ind = np.argmax(emission, axis=-1)
    uniq = [ind[0]] + [ind[t] for t in range(1, len(ind)) if ind[t] != ind[t - 1]]
    return "".join(labels[int(i)] for i in uniq if int(i) != blank)


if __name__ == "__main__":
    # 32 labels: blank '_' + 26 letters + a few punctuation/space symbols.
    labels = ["_"] + list("abcdefghijklmnopqrstuvwxyz") + ["'", " ", ".", ",", "?"]
    assert len(labels) == 32
    decoder = GreedyDecoder(labels, blank=0)

    key = jax.random.PRNGKey(0)
    k1, k2 = jax.random.split(key)

    # 1) Spec shape: single utterance [num_seq, num_label] = [8, 32].
    em1 = jax.random.normal(k1, (8, 32), dtype=jnp.float32)
    got1 = decoder(em1)
    ref1 = _reference_decode(np.asarray(em1), labels, blank=0)
    assert got1 == ref1, f"mismatch: kernel={got1!r} ref={ref1!r}"

    # 2) Batched path exercising S-tiling + the cross-tile carry (nS = 2).
    em2 = jax.random.normal(k2, (2, 160, 32), dtype=jnp.float32)
    got2 = decoder.decode_batch(em2)
    for b in range(2):
        refb = _reference_decode(np.asarray(em2[b]), labels, blank=0)
        assert got2[b] == refb, f"batch {b} mismatch: {got2[b]!r} ref={refb!r}"

    # 3) Deterministic case with a repeated label spanning the 128-row tile edge.
    seq = np.zeros(136, dtype=np.int32)
    seq[:5] = [1, 1, 0, 2, 2]
    seq[120:136] = 3
    em3 = 10.0 * jax.nn.one_hot(jnp.asarray(seq), 32, dtype=jnp.float32)
    got3 = decoder(em3)
    ref3 = _reference_decode(np.asarray(em3), labels, blank=0)
    assert got3 == ref3, f"mismatch: kernel={got3!r} ref={ref3!r}"

    print("KERNEL_OK")
</pallas_src>

<mosaic_0001>
module attributes {stable_mosaic.version = 11 : i64} {
  func.func @_greedy_kernel(%arg0: i32, %arg1: i32, %arg2: memref<1x8x32xf32, #tpu.memory_space<vmem>>, %arg3: memref<1x1x8xi32, #tpu.memory_space<vmem>>, %arg4: memref<1x1xi32, #tpu.memory_space<vmem>>) attributes {dimension_semantics = [#tpu.dimension_semantics<parallel>, #tpu.dimension_semantics<arbitrary>], iteration_bounds = array<i64: 1, 1>, scalar_prefetch = 0 : i64, scratch_operands = 1 : i64, tpu.core_type = #tpu.core_type<tc>, window_params = [{transform_indices = @transform_0, window_bounds = array<i64: 1, 8, 32>}, {transform_indices = @transform_1, window_bounds = array<i64: 1, 1, 8>}]} {
    %c0_i32 = arith.constant 0 : i32
    %0 = arith.cmpi eq, %arg1, %c0_i32 : i32
    %1 = arith.extui %0 : i1 to i32
    %c0_i32_0 = arith.constant 0 : i32
    %2 = arith.cmpi ne, %1, %c0_i32_0 : i32
    scf.if %2 {
      %c-1_i32 = arith.constant -1 : i32
      %46 = vector.broadcast %c-1_i32 : i32 to vector<1x1xi32>
      %c0_14 = arith.constant 0 : index
      %c0_15 = arith.constant 0 : index
      %47 = vector.load %arg4[%c0_14, %c0_15] : memref<1x1xi32, #tpu.memory_space<vmem>>, vector<1x1xi32>
      tpu.vector_store %arg4[%c0_14, %c0_15], %46 {strides = array<i32>} : memref<1x1xi32, #tpu.memory_space<vmem>>, vector<1x1xi32>,
    } else {
    }
    %c0 = arith.constant 0 : index
    %c0_1 = arith.constant 0 : index
    %c0_2 = arith.constant 0 : index
    %3 = vector.load %arg2[%c0, %c0_1, %c0_2] : memref<1x8x32xf32, #tpu.memory_space<vmem>>, vector<1x8x32xf32>
    %4 = vector.shape_cast %3 : vector<1x8x32xf32> to vector<8x32xf32>
    %5 = tpu.iota {dimensions = array<i32: 1>} : vector<8x32xi32>
    %cst = arith.constant dense<0xFF800000> : vector<8xf32>
    %6 = vector.multi_reduction <maximumf>, %4, %cst [1] : vector<8x32xf32> to vector<8xf32>
    %7 = vector.shape_cast %6 : vector<8xf32> to vector<8x1xf32>
    %8 = vector.broadcast %7 : vector<8x1xf32> to vector<8x32xf32>
    %9 = arith.cmpf oeq, %4, %8 : vector<8x32xf32>
    %c32_i32 = arith.constant 32 : i32
    %10 = vector.broadcast %c32_i32 : i32 to vector<8x32xi32>
    %11 = arith.select %9, %5, %10 : vector<8x32xi1>, vector<8x32xi32>
    %cst_3 = arith.constant dense<2147483647> : vector<8xi32>
    %12 = vector.multi_reduction <minsi>, %11, %cst_3 [1] : vector<8x32xi32> to vector<8xi32>
    %13 = vector.shape_cast %12 : vector<8xi32> to vector<8x1xi32>
    %c1_i32 = arith.constant 1 : i32
    %14 = tpu.dynamic_rotate %13 by %c1_i32 dim 0 : vector<8x1xi32>, i32 -> vector<8x1xi32>
    %15 = tpu.iota {dimensions = array<i32: 0>} : vector<8x1xi32>
    %c0_i32_4 = arith.constant 0 : i32
    %16 = vector.broadcast %c0_i32_4 : i32 to vector<8x1xi32>
    %17 = arith.cmpi eq, %15, %16 : vector<8x1xi32>
    %c0_5 = arith.constant 0 : index
    %c0_6 = arith.constant 0 : index
    %18 = vector.load %arg4[%c0_5, %c0_6] : memref<1x1xi32, #tpu.memory_space<vmem>>, vector<1x1xi32>
    %19 = vector.shape_cast %18 : vector<1x1xi32> to vector<1x1xi32>
    %20 = vector.broadcast %19 : vector<1x1xi32> to vector<8x1xi32>
    %21 = arith.select %17, %20, %14 : vector<8x1xi1>, vector<8x1xi32>
    %c0_i32_7 = arith.constant 0 : i32
    %22 = vector.broadcast %c0_i32_7 : i32 to vector<8x1xi32>
    %23 = arith.cmpi ne, %13, %22 : vector<8x1xi32>
    %24 = arith.cmpi ne, %13, %21 : vector<8x1xi32>
    %25 = arith.andi %23, %24 : vector<8x1xi1>
    %26 = arith.extui %25 : vector<8x1xi1> to vector<8x1xi32>
    %27 = vector.extract_strided_slice %13 {offsets = [7, 0], sizes = [1, 1], strides = [1, 1]} : vector<8x1xi32> to vector<1x1xi32>
    %c0_8 = arith.constant 0 : index
    %c0_9 = arith.constant 0 : index
    %28 = vector.load %arg4[%c0_8, %c0_9] : memref<1x1xi32, #tpu.memory_space<vmem>>, vector<1x1xi32>
    tpu.vector_store %arg4[%c0_8, %c0_9], %27 {strides = array<i32>} : memref<1x1xi32, #tpu.memory_space<vmem>>, vector<1x1xi32>,
    %c65536_i32 = arith.constant 65536 : i32
    %29 = vector.broadcast %c65536_i32 : i32 to vector<8x1xi32>
    %30 = arith.muli %26, %29 : vector<8x1xi32>
    %31 = arith.addi %13, %30 : vector<8x1xi32>
    %32 = tpu.iota {dimensions = array<i32: 0>} : vector<8x8xi32>
    %33 = tpu.iota {dimensions = array<i32: 1>} : vector<8x8xi32>
    %34 = arith.cmpi eq, %32, %33 : vector<8x8xi32>
    %35 = arith.sitofp %31 : vector<8x1xi32> to vector<8x1xf32>
    %cst_10 = arith.constant 0.000000e+00 : f32
    %36 = vector.shape_cast %35 : vector<8x1xf32> to vector<8x1xf32>
    %37 = vector.broadcast %36 : vector<8x1xf32> to vector<8x8xf32>
    %38 = vector.broadcast %cst_10 : f32 to vector<8x8xf32>
    %39 = arith.select %34, %37, %38 : vector<8x8xi1>, vector<8x8xf32>
    %cst_11 = arith.constant dense<0.000000e+00> : vector<8xf32>
    %40 = vector.multi_reduction <add>, %39, %cst_11 [0] : vector<8x8xf32> to vector<8xf32>
    %41 = vector.shape_cast %40 : vector<8xf32> to vector<1x8xf32>
    %42 = arith.fptosi %41 : vector<1x8xf32> to vector<1x8xi32>
    %43 = vector.shape_cast %42 : vector<1x8xi32> to vector<1x1x8xi32>
    %c0_12 = arith.constant 0 : index
    %44 = arith.index_cast %arg1 : i32 to index
    %c0_13 = arith.constant 0 : index
    %45 = vector.load %arg3[%c0_12, %44, %c0_13] : memref<1x1x8xi32, #tpu.memory_space<vmem>>, vector<1x1x8xi32>
    tpu.vector_store %arg3[%c0_12, %44, %c0_13], %43 {strides = array<i32>} : memref<1x1x8xi32, #tpu.memory_space<vmem>>, vector<1x1x8xi32>,
    return
  }
  func.func @transform_0(%arg0: i32, %arg1: i32) -> (i32, i32, i32) {
    %c0_i32 = arith.constant 0 : i32
    %c0_i32_0 = arith.constant 0 : i32
    return %arg0, %arg1, %c0_i32 : i32, i32, i32
  }
  func.func @transform_1(%arg0: i32, %arg1: i32) -> (i32, i32, i32) {
    %c0_i32 = arith.constant 0 : i32
    %c0_i32_0 = arith.constant 0 : i32
    %c0_i32_1 = arith.constant 0 : i32
    return %arg0, %c0_i32, %c0_i32_0 : i32, i32, i32
  }
}

</mosaic_0001>

<llo_original>
// kernel: greedy_decode_packed.1
$region0: #{greedy_decode_packed.1}
  #allocation0 [shape = 'u32[]', space=smem, size = 0x4, offset = 0x4, fixed_abs, tag = 'smem constant byte address 0x4 - core index']
  #allocation1 [shape = 'u32[144,128]{1,0:T(1,128)}', space=vmem, size = 0x12000, scoped, tag = 'internal scratch']
  #allocation2 [shape = 's32[1,1]{1,0:T(1,128)}', space=vmem, size = 0x200, scoped, tag = 'scratch operand']
  %s0 = inlined_call_operand.hbm [shape: f32[1,8,32], index: 0, kind: input, shape index: {}]
  %s1 = inlined_call_operand.hbm [shape: s32[1,1,8], index: 1, kind: output, shape index: {}]
  %s2 = sld [smem:[#allocation0]]
  $region22: #{greedy_decode_packed.1} parent=0
    _
  %s4 = ssub.s32 1, %s2
  %s5 = scalar_select 0, %s4, %s2
  $region1: #{greedy_decode_packed.1} parent=0
    #allocation3 [shape = 'u8[4096]{0}', space=vmem, size = 0x1000, scoped, tag = 'input window, operand 0, single buffered']
    #allocation4 [shape = 's32[1]{0}', space=sflag, size = 0x4, scoped, tag = 'scoped memory for greedy_decode_packed.1']
    #allocation5 [shape = 's32[1]{0}', space=sflag, size = 0x4, scoped, tag = 'scoped memory for greedy_decode_packed.1']
    #allocation6 [shape = 'u8[512]{0}', space=vmem, size = 0x400, scoped, tag = 'output window, operand 0, single buffered']
    %6 = vsyncpa [#allocation4], 0
    %7 = vsyncpa [#allocation5], 0
    // Predicated region
    $region2: #{greedy_decode_packed.1} parent=1 // pred_check
      _
    $region3: #{greedy_decode_packed.1} parent=1 // pred_check_branch
      %9 = sbr.rel (0) target = $region5
    $region4: #{greedy_decode_packed.1} parent=1 // pred_region
      %s11 = ssub.s32 128, 128
      %12 = vsyncadd [#allocation4], %s11
      %s14 = sshll.u32 [#allocation3], 4
      %s15 = int_to_ptr.vmem [resolvable:$true] %s14
      %17 = dma.hbm_to_vmem [thread:$0]  %s0, 128, %s15, [#allocation4]
    $region5: #{greedy_decode_packed.1} parent=1 // pred_fallthru
      _
    // Predicated region
    $region6: #{greedy_decode_packed.1} parent=1 // pred_check
      _
    $region7: #{greedy_decode_packed.1} parent=1 // pred_check_branch
      %19 = sbr.rel (0) target = $region9
    $region8: #{greedy_decode_packed.1} parent=1 // pred_region
      %20 = dma.done [#allocation4], 128
    $region9: #{greedy_decode_packed.1} parent=1 // pred_fallthru
      _
    %p21 = scmp.eq.s32.totalorder 0, 0
    // Predicated region
    $region10: #{greedy_decode_packed.1} parent=1 // pred_check
      %p22 = pneg %p21
    $region11: #{greedy_decode_packed.1} parent=1 // pred_check_branch
      %24 = sbr.rel (%p22) target = $region13
    $region12: #{greedy_decode_packed.1} parent=1 // pred_region
      %vm25 = vcmask 0
      %26 = vst.msk [vmem:[#allocation2] sm:$0x1] %vm25, 4294967295
    $region13: #{greedy_decode_packed.1} parent=1 // pred_fallthru
      _
    %v27 = vld [vmem:[#allocation3] sm:$0xff]
    %v28 = vlaneseq
    %v29 = vand.u32 %v28, 127
    %vm30 = vcmask 261120
    %v31 = vsel %vm30, %v27, -inf
    %32 = vmax.xlane.f32.xlu0 %v31
    %v33 = vpop.xlane.xlu0 %32
    %vm34 = vcmp.eq.f32.partialorder %v27, %v33
    %v35 = vsel %vm34, %v29, 32
    %v36 = vsel %vm30, %v35, 2147483647
    %v37 = vand.u32 %v36, 65535
    %v38 = vshra.s32 %v36, 16
    %v39 = vcvt.s32.f32 %v37
    %v40 = vcvt.s32.f32 %v38
    %41 = vmin.xlane.f32.xlu0 %v40
    %v42 = vpop.xlane.xlu0 %41
    %vm43 = vcmp.eq.f32.partialorder %v40, %v42
    %v44 = vsel %vm43, %v39, inf
    %45 = vmin.xlane.f32.xlu0 %v44
    %v46 = vpop.xlane.xlu0 %45
    %v47 = vcvt.f32.s32 %v46
    %v48 = vcvt.f32.s32 %v42
    %v49 = vshll.u32 %v48, 16
    %v50 = vadd.s32 %v49, %v47
    %v51 = vrot.slane %v50, 7
    %v52 = vlaneseq
    %v53 = vshrl.u32 %v52, 7
    %vm54 = vcmp.eq.s32.totalorder %v53, 0
    %v55 = vld [vmem:[#allocation2] sm:$0x1]
    %v56 = vlaneseq
    %v57 = vshrl.u32 %v56, 7
    %v58 = vsub.s32 0, %v57
    %v59 = vrot.slane %v55, %v58
    %v60 = vsel %vm54, %v59, %v51
    %vm61 = vcmp.ne.s32.totalorder %v50, 0
    %vm62 = vcmp.ne.s32.totalorder %v50, %v60
    %vm63 = vmand %vm61, %vm62
    %v64 = vsel %vm63, 1, 0
    %vm65 = vcmask 7175
    %66 = vst.msk [vmem:[#allocation2 - $0x7] sm:$0x80] %vm65, %v50
    %v67 = vmul.u32 %v64, 65536
    %v68 = vadd.s32 %v50, %v67
    %vm69 = vcmp.eq.s32.totalorder %v53, %v29
    %v70 = vcvt.s32.f32 %v68
    %72 = vset.pattern.permute.xlu0 0
    %73 = vperm.xlu0 %72, %v70
    %v74 = vpop.permute.xlu0 %73
    %v76 = vsel %vm69, %v74, 0.0
    %vm77 = vcmask 64512
    %v78 = vsel %vm77, %v76, 0.0
    %v79 = vrot.slane %v78, 4
    %v80 = vadd.f32 %v78, %v79
    %v81 = vrot.slane %v80, 2
    %v82 = vadd.f32 %v80, %v81
    %v83 = vrot.slane %v82, 1
    %v84 = vadd.f32 %v82, %v83
    %v85 = vcvt.f32.s32.to.zero.pseudo %v84
    %vm86 = vcmask 57344
    %87 = vst.msk [vmem:[#allocation6] sm:$0x1] %vm86, %v85
    // Predicated region
    $region14: #{greedy_decode_packed.1} parent=1 // pred_check
      _
    $region15: #{greedy_decode_packed.1} parent=1 // pred_check_branch
      %89 = sbr.rel (0) target = $region17
    $region16: #{greedy_decode_packed.1} parent=1 // pred_region
      %s91 = ssub.s32 16, 16
      %92 = vsyncadd [#allocation5], %s91
      %s94 = sshll.u32 [#allocation6], 4
      %s95 = int_to_ptr.vmem [resolvable:$true] %s94
      %97 = dma.vmem_to_hbm [thread:$0]  %s95, 16, %s1, [#allocation5]
    $region17: #{greedy_decode_packed.1} parent=1 // pred_fallthru
      _
    // Predicated region
    $region18: #{greedy_decode_packed.1} parent=1 // pred_check
      _
    $region19: #{greedy_decode_packed.1} parent=1 // pred_check_branch
      %99 = sbr.rel (0) target = $region21
    $region20: #{greedy_decode_packed.1} parent=1 // pred_region
      %100 = dma.done [#allocation5], 16
    $region21: #{greedy_decode_packed.1} parent=1 // pred_fallthru
      _
    %101 = vsyncpa [#allocation4], 1
    %102 = vsyncpa [#allocation5], 1

</llo_original>
